<compile_context>
chip_gen: v6e
topology: v6e:2x2x1
jax: 0.10.0
libtpu: 0.0.40
codegen_flags: <defaults>
</compile_context>

<pallas_src>
import math

import jax
import jax.numpy as jnp
from jax.experimental import pallas as pl
from jax.experimental.pallas import tpu as pltpu

LANE = 128
SUBLANE = 8
MXU_TILE = 256  # M-tile granularity: full width on v6e/v7x MXU, two passes on v5e.


def _round_up(n, m):
    return ((n + m - 1) // m) * m


def _vmem_limit_bytes():
    """Generation-aware scoped-VMEM limit: ~3/4 of physical capacity, capped at 100 MiB.

    v5e/v6e (128 MiB physical) -> 96 MiB; v7x (64 MiB per TC) -> 48 MiB.
    Falls back to a v7x-safe constant if the query is unavailable.
    """
    try:
        cap = int(pltpu.get_tpu_info().vmem_capacity_bytes)
    except Exception:
        cap = 64 * 1024 * 1024
    return max(32 * 1024 * 1024, min(cap * 3 // 4, 100 * 1024 * 1024))


def mlp_kernel(x_ref, w1_ref, b1_ref, w2_ref, b2_ref, o_ref):
    # Layer 1: Linear (bf16 operands, fp32 accumulate) + bias + ReLU in fp32.
    h = jnp.dot(x_ref[...], w1_ref[...], preferred_element_type=jnp.float32)
    h = jnp.maximum(h + b1_ref[...], 0.0)
    # Dropout(p=0.0) -> identity.
    # Layer 2: Linear (cast h to bf16 for the MXU, fp32 accumulate) + bias.
    y = jnp.dot(h.astype(w2_ref.dtype), w2_ref[...],
                preferred_element_type=jnp.float32)
    o_ref[...] = (y + b2_ref[...]).astype(o_ref.dtype)
    # Dropout(p=0.0) on the last layer -> identity.


def _choose_tile_b(B, in_pad, hid_pad, out_pad, out_bytes, vmem_budget_bytes):
    """Pick the batch tile.

    * Resident weights/biases are charged 2x (Pallas double-buffers every input, even
      with a constant index_map).
    * Prefers MXU-friendly tiles (multiples of 256 rows, <= 1024).
    * Keeps >= 2 grid steps when the padded batch exceeds one MXU tile so v7x's
      "parallel" batch axis is sharded over both TensorCores.
    """
    bf16, f32 = 2, 4
    resident = 2 * ((in_pad * hid_pad + hid_pad * out_pad) * bf16
                    + (hid_pad + out_pad) * f32)
    per_row = (2 * in_pad * bf16              # x tile, double-buffered
               + 2 * out_pad * out_bytes      # output tile, double-buffered
               + hid_pad * (f32 + bf16))      # fp32 hidden + bf16 copy for 2nd dot
    cap_rows = max((vmem_budget_bytes - resident) // per_row, SUBLANE)

    pB8 = _round_up(B, SUBLANE)
    if pB8 <= MXU_TILE:
        return pB8  # whole (sublane-padded) batch as a single tile

    tile = min(cap_rows, 1024)
    if tile >= MXU_TILE:
        tile = (tile // MXU_TILE) * MXU_TILE
        # Keep at least 2 grid steps so v7x's two TensorCores both get work.
        half = _round_up(-(-pB8 // 2), MXU_TILE)
        tile = min(tile, half)
    else:
        # VMEM-tight fallback (very large hidden dim): biggest multiple of 8 that fits.
        # TODO(synk): add "parallel" N and "arbitrary" K grid axes with an fp32 VMEM
        # scratch accumulator (+ pl.when init/finalize) instead of starving the MXU.
        tile = max(SUBLANE, (tile // SUBLANE) * SUBLANE)
    return int(tile)


def _pad2(a, rows, cols, dtype):
    a = jnp.asarray(a)
    r, c = a.shape
    if (r, c) == (rows, cols):
        return a.astype(dtype)
    return jnp.zeros((rows, cols), dtype).at[:r, :c].set(a.astype(dtype))


def make_mlp_forward(w1, b1, w2, b2, *, out_dtype=None, compute_dtype=jnp.bfloat16):
    """Pre-pads / casts the parameters ONCE (outside the hot path) and returns a
    jitted forward: x (B, in_dim) -> y (B, out_dim).

    w1: (in_dim, hidden), b1: (hidden,) or (1, hidden),
    w2: (hidden, out_dim), b2: (out_dim,) or (1, out_dim).
    """
    in_dim, hidden = w1.shape
    hidden_w, out_dim = w2.shape
    assert hidden == hidden_w

    # Lane-dense zero padding keeps the math exact: padded input cols are 0, padded
    # hidden units are ReLU(0 + 0) = 0, padded output cols are sliced off.
    in_pad = _round_up(in_dim, LANE)
    hid_pad = _round_up(hidden, LANE)
    out_pad = _round_up(out_dim, LANE)

    w1p = _pad2(w1, in_pad, hid_pad, compute_dtype)
    b1p = _pad2(jnp.reshape(b1, (1, -1)), 1, hid_pad, jnp.float32)
    w2p = _pad2(w2, hid_pad, out_pad, compute_dtype)
    b2p = _pad2(jnp.reshape(b2, (1, -1)), 1, out_pad, jnp.float32)

    vmem_limit = _vmem_limit_bytes()
    vmem_budget = (vmem_limit * 7) // 8  # headroom for Mosaic internals

    @jax.jit
    def forward(x):
        B, xd = x.shape
        assert xd == in_dim, (xd, in_dim)
        odt = out_dtype if out_dtype is not None else x.dtype
        out_bytes = jnp.dtype(odt).itemsize

        tile_b = _choose_tile_b(B, in_pad, hid_pad, out_pad, out_bytes, vmem_budget)
        pB = _round_up(B, tile_b)

        if pB == B and in_pad == in_dim and x.dtype == compute_dtype:
            xp = x
        else:
            xp = jnp.zeros((pB, in_pad), compute_dtype).at[:B, :in_dim].set(
                x.astype(compute_dtype))

        grid = (pB // tile_b,)
        flops = 2 * pB * (in_pad * hid_pad + hid_pad * out_pad)
        bytes_accessed = (xp.size * 2 + w1p.size * 2 + w2p.size * 2
                          + b1p.size * 4 + b2p.size * 4 + pB * out_pad * out_bytes)

        out_padded = pl.pallas_call(
            mlp_kernel,
            out_shape=jax.ShapeDtypeStruct((pB, out_pad), odt),
            grid=grid,
            in_specs=[
                pl.BlockSpec((tile_b, in_pad), lambda i: (i, 0)),    # x: batch-tiled
                pl.BlockSpec((in_pad, hid_pad), lambda i: (0, 0)),   # w1: resident
                pl.BlockSpec((1, hid_pad), lambda i: (0, 0)),        # b1: resident
                pl.BlockSpec((hid_pad, out_pad), lambda i: (0, 0)),  # w2: resident
                pl.BlockSpec((1, out_pad), lambda i: (0, 0)),        # b2: resident
            ],
            out_specs=pl.BlockSpec((tile_b, out_pad), lambda i: (i, 0)),
            compiler_params=pltpu.CompilerParams(
                dimension_semantics=("parallel",),   # shard batch grid over v7x's 2 TCs
                vmem_limit_bytes=int(vmem_limit),
            ),
            cost_estimate=pl.CostEstimate(
                flops=int(flops), transcendentals=0,
                bytes_accessed=int(bytes_accessed)),
        )(xp, w1p, b1p, w2p, b2p)

        if pB == B and out_pad == out_dim:
            return out_padded
        return out_padded[:B, :out_dim]

    return forward


def multi_layer_feed_forward(x, w1, b1, w2, b2, **kwargs):
    """One-shot convenience wrapper (pads params per call; prefer make_mlp_forward)."""
    return make_mlp_forward(w1, b1, w2, b2, **kwargs)(x)


def init_linear_params(key, fan_in, fan_out, dtype=jnp.float32):
    """Deterministic init mirroring torch.nn.Linear default:
    U(-1/sqrt(fan_in), 1/sqrt(fan_in)) for both weight and bias (weight stored transposed)."""
    k_w, k_b = jax.random.split(key)
    bound = 1.0 / math.sqrt(fan_in)
    w = jax.random.uniform(k_w, (fan_in, fan_out), dtype, -bound, bound)
    b = jax.random.uniform(k_b, (1, fan_out), dtype, -bound, bound)
    return w, b


def reference_forward_f32(x, w1, b1, w2, b2):
    h = jnp.maximum(x @ w1 + b1, 0.0)
    return h @ w2 + b2


def reference_forward_bf16(x, w1, b1, w2, b2):
    """Precision-matched reference (bf16 MXU operands, fp32 accumulation)."""
    h = jnp.dot(x.astype(jnp.bfloat16), w1.astype(jnp.bfloat16),
                preferred_element_type=jnp.float32) + b1
    h = jnp.maximum(h, 0.0)
    return jnp.dot(h.astype(jnp.bfloat16), w2.astype(jnp.bfloat16),
                   preferred_element_type=jnp.float32) + b2


if __name__ == "__main__":
    # Module config: in_dim=16, hidden_dim=32, out_dim=8, dropout=0.0
    in_dim, hidden_dim, out_dim = 16, 32, 8
    batch = 8

    key = jax.random.PRNGKey(0)
    k_x, k_l1, k_l2 = jax.random.split(key, 3)

    x = jax.random.normal(k_x, (batch, in_dim), jnp.float32)
    w1, b1 = init_linear_params(k_l1, in_dim, hidden_dim)
    w2, b2 = init_linear_params(k_l2, hidden_dim, out_dim)

    forward = make_mlp_forward(w1, b1, w2, b2)
    out = jax.block_until_ready(forward(x))
    assert out.shape == (batch, out_dim), out.shape

    ref_bf16 = reference_forward_bf16(x, w1, b1, w2, b2)
    ref_f32 = reference_forward_f32(x, w1, b1, w2, b2)
    assert jnp.allclose(out, ref_bf16, atol=1e-3, rtol=1e-3), "mismatch vs bf16-path reference"
    assert jnp.allclose(out, ref_f32, atol=5e-2, rtol=5e-2), "mismatch vs fp32 reference"

    print("KERNEL_OK")
</pallas_src>

<mosaic_0001>
module attributes {stable_mosaic.version = 11 : i64} {
  func.func @mlp_kernel(%arg0: i32, %arg1: memref<8x128xbf16, #tpu.memory_space<vmem>>, %arg2: memref<128x128xbf16, #tpu.memory_space<vmem>>, %arg3: memref<1x128xf32, #tpu.memory_space<vmem>>, %arg4: memref<128x128xbf16, #tpu.memory_space<vmem>>, %arg5: memref<1x128xf32, #tpu.memory_space<vmem>>, %arg6: memref<8x128xf32, #tpu.memory_space<vmem>>) attributes {dimension_semantics = [#tpu.dimension_semantics<parallel>], iteration_bounds = array<i64: 1>, scalar_prefetch = 0 : i64, scratch_operands = 0 : i64, tpu.core_type = #tpu.core_type<tc>, window_params = [{transform_indices = @transform_0, window_bounds = array<i64: 8, 128>}, {pipeline_mode = #tpu.pipeline_mode<synchronous>, transform_indices = @transform_1, window_bounds = array<i64: 128, 128>}, {pipeline_mode = #tpu.pipeline_mode<synchronous>, transform_indices = @transform_2, window_bounds = array<i64: 1, 128>}, {pipeline_mode = #tpu.pipeline_mode<synchronous>, transform_indices = @transform_3, window_bounds = array<i64: 128, 128>}, {pipeline_mode = #tpu.pipeline_mode<synchronous>, transform_indices = @transform_4, window_bounds = array<i64: 1, 128>}, {transform_indices = @transform_5, window_bounds = array<i64: 8, 128>}]} {
    %c0 = arith.constant 0 : index
    %c0_0 = arith.constant 0 : index
    %0 = vector.load %arg1[%c0, %c0_0] : memref<8x128xbf16, #tpu.memory_space<vmem>>, vector<8x128xbf16>
    %c0_1 = arith.constant 0 : index
    %c0_2 = arith.constant 0 : index
    %1 = vector.load %arg2[%c0_1, %c0_2] : memref<128x128xbf16, #tpu.memory_space<vmem>>, vector<128x128xbf16>
    %cst = arith.constant dense<0.000000e+00> : vector<8x128xf32>
    %2 = tpu.matmul %0, %1, %cst {dimension_numbers = #tpu.dot_dimension_numbers<[1], [0], [0], [1], [0, 0, 1, 1], [], []>} : vector<8x128xbf16>, vector<128x128xbf16>, vector<8x128xf32> -> vector<8x128xf32>
    %c0_3 = arith.constant 0 : index
    %c0_4 = arith.constant 0 : index
    %3 = vector.load %arg3[%c0_3, %c0_4] : memref<1x128xf32, #tpu.memory_space<vmem>>, vector<1x128xf32>
    %4 = vector.broadcast %3 : vector<1x128xf32> to vector<8x128xf32>
    %5 = arith.addf %2, %4 : vector<8x128xf32>
    %cst_5 = arith.constant 0.000000e+00 : f32
    %6 = vector.broadcast %cst_5 : f32 to vector<8x128xf32>
    %7 = arith.maximumf %5, %6 : vector<8x128xf32>
    %8 = arith.truncf %7 : vector<8x128xf32> to vector<8x128xbf16>
    %c0_6 = arith.constant 0 : index
    %c0_7 = arith.constant 0 : index
    %9 = vector.load %arg4[%c0_6, %c0_7] : memref<128x128xbf16, #tpu.memory_space<vmem>>, vector<128x128xbf16>
    %cst_8 = arith.constant dense<0.000000e+00> : vector<8x128xf32>
    %10 = tpu.matmul %8, %9, %cst_8 {dimension_numbers = #tpu.dot_dimension_numbers<[1], [0], [0], [1], [0, 0, 1, 1], [], []>} : vector<8x128xbf16>, vector<128x128xbf16>, vector<8x128xf32> -> vector<8x128xf32>
    %c0_9 = arith.constant 0 : index
    %c0_10 = arith.constant 0 : index
    %11 = vector.load %arg5[%c0_9, %c0_10] : memref<1x128xf32, #tpu.memory_space<vmem>>, vector<1x128xf32>
    %12 = vector.broadcast %11 : vector<1x128xf32> to vector<8x128xf32>
    %13 = arith.addf %10, %12 : vector<8x128xf32>
    %c0_11 = arith.constant 0 : index
    %c0_12 = arith.constant 0 : index
    %14 = vector.load %arg6[%c0_11, %c0_12] : memref<8x128xf32, #tpu.memory_space<vmem>>, vector<8x128xf32>
    tpu.vector_store %arg6[%c0_11, %c0_12], %13 {strides = array<i32>} : memref<8x128xf32, #tpu.memory_space<vmem>>, vector<8x128xf32>,
    return
  }
  func.func @transform_0(%arg0: i32) -> (i32, i32) {
    %c0_i32 = arith.constant 0 : i32
    %c0_i32_0 = arith.constant 0 : i32
    return %arg0, %c0_i32 : i32, i32
  }
  func.func @transform_1(%arg0: i32) -> (i32, i32) {
    %c0_i32 = arith.constant 0 : i32
    %c0_i32_0 = arith.constant 0 : i32
    %c0_i32_1 = arith.constant 0 : i32
    return %c0_i32, %c0_i32_0 : i32, i32
  }
  func.func @transform_2(%arg0: i32) -> (i32, i32) {
    %c0_i32 = arith.constant 0 : i32
    %c0_i32_0 = arith.constant 0 : i32
    %c0_i32_1 = arith.constant 0 : i32
    return %c0_i32, %c0_i32_0 : i32, i32
  }
  func.func @transform_3(%arg0: i32) -> (i32, i32) {
    %c0_i32 = arith.constant 0 : i32
    %c0_i32_0 = arith.constant 0 : i32
    %c0_i32_1 = arith.constant 0 : i32
    return %c0_i32, %c0_i32_0 : i32, i32
  }
  func.func @transform_4(%arg0: i32) -> (i32, i32) {
    %c0_i32 = arith.constant 0 : i32
    %c0_i32_0 = arith.constant 0 : i32
    %c0_i32_1 = arith.constant 0 : i32
    return %c0_i32, %c0_i32_0 : i32, i32
  }
  func.func @transform_5(%arg0: i32) -> (i32, i32) {
    %c0_i32 = arith.constant 0 : i32
    %c0_i32_0 = arith.constant 0 : i32
    return %arg0, %c0_i32 : i32, i32
  }
}

</mosaic_0001>

<llo_original>
// kernel: forward.1
$region0: #{forward.1}
  #allocation0 [shape = 'u32[]', space=smem, size = 0x4, offset = 0x4, fixed_abs, tag = 'smem constant byte address 0x4 - core index']
  #allocation1 [shape = 'u32[144,128]{1,0:T(1,128)}', space=vmem, size = 0x12000, scoped, tag = 'internal scratch']
  %s0 = inlined_call_operand.vmem [shape: bf16[8,128], index: 0, kind: input, shape index: {}]
  %s1 = inlined_call_operand.hbm [shape: bf16[128,128], index: 1, kind: input, shape index: {}]
  %s2 = inlined_call_operand.vmem [shape: f32[1,128], index: 2, kind: input, shape index: {}]
  %s3 = inlined_call_operand.hbm [shape: bf16[128,128], index: 3, kind: input, shape index: {}]
  %s4 = inlined_call_operand.vmem [shape: f32[1,128], index: 4, kind: input, shape index: {}]
  %s5 = inlined_call_operand.hbm [shape: f32[8,128], index: 5, kind: output, shape index: {}]
  %s6 = sld [smem:[#allocation0]]
  $region38: #{forward.1} parent=0
    _
  %s8 = ssub.s32 1, %s6
  %s9 = scalar_select 0, %s8, %s6
  $region1: #{forward.1} parent=0
    #allocation2 [shape = 'u8[32768]{0}', space=vmem, size = 0x8000, scoped, tag = 'input window, operand 1, single buffered']
    #allocation3 [shape = 's32[1]{0}', space=sflag, size = 0x4, scoped, tag = 'scoped memory for forward.1']
    #allocation4 [shape = 's32[1]{0}', space=sflag, size = 0x4, scoped, tag = 'scoped memory for forward.1']
    #allocation5 [shape = 'u8[32768]{0}', space=vmem, size = 0x8000, scoped, tag = 'input window, operand 3, single buffered']
    #allocation6 [shape = 's32[1]{0}', space=sflag, size = 0x4, scoped, tag = 'scoped memory for forward.1']
    #allocation7 [shape = 'u8[4096]{0}', space=vmem, size = 0x1000, scoped, tag = 'output window, operand 0, single buffered']
    %10 = vsyncpa [#allocation3], 0
    %11 = vsyncpa [#allocation6], 0
    %12 = vsyncpa [#allocation4], 0
    // Predicated region
    $region2: #{forward.1} parent=1 // pred_check
      _
    $region3: #{forward.1} parent=1 // pred_check_branch
      %14 = sbr.rel (0) target = $region5
    $region4: #{forward.1} parent=1 // pred_region
      _
    $region5: #{forward.1} parent=1 // pred_fallthru
      _
    // Predicated region
    $region6: #{forward.1} parent=1 // pred_check
      _
    $region7: #{forward.1} parent=1 // pred_check_branch
      %16 = sbr.rel (0) target = $region9
    $region8: #{forward.1} parent=1 // pred_region
      %s18 = ssub.s32 1024, 1024
      %19 = vsyncadd [#allocation3], %s18
      %s20 = sshll.u32 [#allocation2], 4
      %s21 = int_to_ptr.vmem [resolvable:$true] %s20
      %26 = dma.hbm_to_vmem [thread:$0]  %s1, 1024, %s21, [#allocation3], 64, 64, 4
    $region9: #{forward.1} parent=1 // pred_fallthru
      _
    // Predicated region
    $region10: #{forward.1} parent=1 // pred_check
      _
    $region11: #{forward.1} parent=1 // pred_check_branch
      %28 = sbr.rel (0) target = $region13
    $region12: #{forward.1} parent=1 // pred_region
      _
    $region13: #{forward.1} parent=1 // pred_fallthru
      _
    // Predicated region
    $region14: #{forward.1} parent=1 // pred_check
      _
    $region15: #{forward.1} parent=1 // pred_check_branch
      %30 = sbr.rel (0) target = $region17
    $region16: #{forward.1} parent=1 // pred_region
      %s32 = ssub.s32 1024, 1024
      %33 = vsyncadd [#allocation6], %s32
      %s34 = sshll.u32 [#allocation5], 4
      %s35 = int_to_ptr.vmem [resolvable:$true] %s34
      %40 = dma.hbm_to_vmem [thread:$0]  %s3, 1024, %s35, [#allocation6], 64, 64, 4
    $region17: #{forward.1} parent=1 // pred_fallthru
      _
    // Predicated region
    $region18: #{forward.1} parent=1 // pred_check
      _
    $region19: #{forward.1} parent=1 // pred_check_branch
      %42 = sbr.rel (0) target = $region21
    $region20: #{forward.1} parent=1 // pred_region
      _
    $region21: #{forward.1} parent=1 // pred_fallthru
      _
    // Predicated region
    $region22: #{forward.1} parent=1 // pred_check
      _
    $region23: #{forward.1} parent=1 // pred_check_branch
      %44 = sbr.rel (0) target = $region25
    $region24: #{forward.1} parent=1 // pred_region
      %45 = dma.done [#allocation3], 1024
    $region25: #{forward.1} parent=1 // pred_fallthru
      _
    // Predicated region
    $region26: #{forward.1} parent=1 // pred_check
      _
    $region27: #{forward.1} parent=1 // pred_check_branch
      %47 = sbr.rel (0) target = $region29
    $region28: #{forward.1} parent=1 // pred_region
      %48 = dma.done [#allocation6], 1024
    $region29: #{forward.1} parent=1 // pred_fallthru
      _
    %v50 = vld [vmem:[%s0] sm:$0xf]
    %v51 = vld [vmem:[#allocation2] sm:$0xf]
    %v52 = vld [vmem:[#allocation2 + $0x4] sm:$0xf]
    %v53 = vld [vmem:[#allocation2 + $0x8] sm:$0xf]
    %v54 = vld [vmem:[#allocation2 + $0xc] sm:$0xf]
    %v55 = vld [vmem:[#allocation2 + $0x10] sm:$0xf]
    %v56 = vld [vmem:[#allocation2 + $0x14] sm:$0xf]
    %v57 = vld [vmem:[#allocation2 + $0x18] sm:$0xf]
    %v58 = vld [vmem:[#allocation2 + $0x1c] sm:$0xf]
    %v59 = vld [vmem:[#allocation2 + $0x20] sm:$0xf]
    %v60 = vld [vmem:[#allocation2 + $0x24] sm:$0xf]
    %v61 = vld [vmem:[#allocation2 + $0x28] sm:$0xf]
    %v62 = vld [vmem:[#allocation2 + $0x2c] sm:$0xf]
    %v63 = vld [vmem:[#allocation2 + $0x30] sm:$0xf]
    %v64 = vld [vmem:[#allocation2 + $0x34] sm:$0xf]
    %v65 = vld [vmem:[#allocation2 + $0x38] sm:$0xf]
    %v66 = vld [vmem:[#allocation2 + $0x3c] sm:$0xf]
    %v67 = vld [vmem:[%s2] sm:$0x1]
    %v69 = vlaneseq
    %v70 = vshrl.u32 %v69, 7
    %v71 = vsub.s32 0, %v70
    %v72 = vrot.slane %v67, %v71
    %v90 = vunpack.c.l.b16 %v51
    %v91 = vunpack.c.l.b16 %v52
    %v92 = vunpack.c.l.b16 %v53
    %v93 = vunpack.c.l.b16 %v54
    %v94 = vunpack.c.l.b16 %v55
    %v95 = vunpack.c.l.b16 %v56
    %v96 = vunpack.c.l.b16 %v57
    %v97 = vunpack.c.l.b16 %v58
    %v98 = vunpack.c.l.b16 %v59
    %v99 = vunpack.c.l.b16 %v60
    %v100 = vunpack.c.l.b16 %v61
    %v101 = vunpack.c.l.b16 %v62
    %v102 = vunpack.c.l.b16 %v63
    %v103 = vunpack.c.l.b16 %v64
    %v104 = vunpack.c.l.b16 %v65
    %v105 = vunpack.c.l.b16 %v66
    %v106 = vpack.c.b16 %v91, %v90
    %v107 = vpack.c.b16 %v93, %v92
    %v108 = vpack.c.b16 %v95, %v94
    %v109 = vpack.c.b16 %v97, %v96
    %v110 = vpack.c.b16 %v99, %v98
    %v111 = vpack.c.b16 %v101, %v100
    %v112 = vpack.c.b16 %v103, %v102
    %v113 = vpack.c.b16 %v105, %v104
    %122 = vmatprep.subr.bf16.mxu0 0
    %123 = vmatpush1.bf16.msra.mxu0 %v113
    %124 = vmatprep.subr.bf16.mxu0 0
    %125 = vmatpush1.bf16.msra.mxu0 %v112
    %126 = vmatprep.subr.bf16.mxu0 0
    %127 = vmatpush1.bf16.msra.mxu0 %v111
    %128 = vmatprep.subr.bf16.mxu0 0
    %129 = vmatpush1.bf16.msra.mxu0 %v110
    %130 = vmatprep.subr.bf16.mxu0 0
    %131 = vmatpush1.bf16.msra.mxu0 %v109
    %132 = vmatprep.subr.bf16.mxu0 0
    %133 = vmatpush1.bf16.msra.mxu0 %v108
    %134 = vmatprep.subr.bf16.mxu0 0
    %135 = vmatpush1.bf16.msra.mxu0 %v107
    %136 = vmatprep.subr.bf16.mxu0 0
    %137 = vmatpush1.bf16.msra.mxu0 %v106
    %138 = vmatprep.subr.bf16.mxu0 0
    %139 = vmatpush2.bf16.msra.mxu0 0
    %140 = vmatprep.subr.bf16.mxu0 0
    %141 = vmatpush2.bf16.msra.mxu0 0
    %142 = vmatprep.subr.bf16.mxu0 0
    %143 = vmatpush2.bf16.msra.mxu0 0
    %144 = vmatprep.subr.bf16.mxu0 0
    %145 = vmatpush2.bf16.msra.mxu0 0
    %146 = vmatprep.subr.bf16.mxu0 0
    %147 = vmatpush2.bf16.msra.mxu0 0
    %148 = vmatprep.subr.bf16.mxu0 0
    %149 = vmatpush2.bf16.msra.mxu0 0
    %150 = vmatprep.subr.bf16.mxu0 0
    %151 = vmatpush2.bf16.msra.mxu0 0
    %152 = vmatprep.subr.bf16.mxu0 0
    %153 = vmatpush2.bf16.msra.mxu0 0
    %154 = vmatprep.mubr.bf16.mxu0 0
    %155 = vmatmul.mubr.bf16.gmra.mxu0 %v50
    %v156 = vpop.f32.mrf.mxu0
    %v157 = vadd.f32 %v72, %v156
    %v158 = vpop.f32.mrf.mxu0
    %v159 = vpop.f32.mrf.mxu0
    %v160 = vpop.f32.mrf.mxu0
    %161 = vdwg.mxu0
    %v162 = vmax.f32 %v157, 0.0
    %v163 = vpack.c.bf16 %v162, %v162
    %v164 = vld [vmem:[#allocation5] sm:$0xf]
    %v165 = vld [vmem:[#allocation5 + $0x4] sm:$0xf]
    %v166 = vld [vmem:[#allocation5 + $0x8] sm:$0xf]
    %v167 = vld [vmem:[#allocation5 + $0xc] sm:$0xf]
    %v168 = vld [vmem:[#allocation5 + $0x10] sm:$0xf]
    %v169 = vld [vmem:[#allocation5 + $0x14] sm:$0xf]
    %v170 = vld [vmem:[#allocation5 + $0x18] sm:$0xf]
    %v171 = vld [vmem:[#allocation5 + $0x1c] sm:$0xf]
    %v172 = vld [vmem:[#allocation5 + $0x20] sm:$0xf]
    %v173 = vld [vmem:[#allocation5 + $0x24] sm:$0xf]
    %v174 = vld [vmem:[#allocation5 + $0x28] sm:$0xf]
    %v175 = vld [vmem:[#allocation5 + $0x2c] sm:$0xf]
    %v176 = vld [vmem:[#allocation5 + $0x30] sm:$0xf]
    %v177 = vld [vmem:[#allocation5 + $0x34] sm:$0xf]
    %v178 = vld [vmem:[#allocation5 + $0x38] sm:$0xf]
    %v179 = vld [vmem:[#allocation5 + $0x3c] sm:$0xf]
    %v180 = vld [vmem:[%s4] sm:$0x1]
    %v182 = vlaneseq
    %v183 = vshrl.u32 %v182, 7
    %v184 = vsub.s32 0, %v183
    %v185 = vrot.slane %v180, %v184
    %v203 = vunpack.c.l.b16 %v164
    %v204 = vunpack.c.l.b16 %v165
    %v205 = vunpack.c.l.b16 %v166
    %v206 = vunpack.c.l.b16 %v167
    %v207 = vunpack.c.l.b16 %v168
    %v208 = vunpack.c.l.b16 %v169
    %v209 = vunpack.c.l.b16 %v170
    %v210 = vunpack.c.l.b16 %v171
    %v211 = vunpack.c.l.b16 %v172
    %v212 = vunpack.c.l.b16 %v173
    %v213 = vunpack.c.l.b16 %v174
    %v214 = vunpack.c.l.b16 %v175
    %v215 = vunpack.c.l.b16 %v176
    %v216 = vunpack.c.l.b16 %v177
    %v217 = vunpack.c.l.b16 %v178
    %v218 = vunpack.c.l.b16 %v179
    %v219 = vpack.c.b16 %v204, %v203
    %v220 = vpack.c.b16 %v206, %v205
    %v221 = vpack.c.b16 %v208, %v207
    %v222 = vpack.c.b16 %v210, %v209
    %v223 = vpack.c.b16 %v212, %v211
    %v224 = vpack.c.b16 %v214, %v213
    %v225 = vpack.c.b16 %v216, %v215
    %v226 = vpack.c.b16 %v218, %v217
    %235 = vmatprep.subr.bf16.mxu0 0
    %236 = vmatpush1.bf16.msra.mxu0 %v226
    %237 = vmatprep.subr.bf16.mxu0 0
    %238 = vmatpush1.bf16.msra.mxu0 %v225
    %239 = vmatprep.subr.bf16.mxu0 0
    %240 = vmatpush1.bf16.msra.mxu0 %v224
    %241 = vmatprep.subr.bf16.mxu0 0
    %242 = vmatpush1.bf16.msra.mxu0 %v223
    %243 = vmatprep.subr.bf16.mxu0 0
    %244 = vmatpush1.bf16.msra.mxu0 %v222
    %245 = vmatprep.subr.bf16.mxu0 0
    %246 = vmatpush1.bf16.msra.mxu0 %v221
    %247 = vmatprep.subr.bf16.mxu0 0
    %248 = vmatpush1.bf16.msra.mxu0 %v220
    %249 = vmatprep.subr.bf16.mxu0 0
    %250 = vmatpush1.bf16.msra.mxu0 %v219
    %251 = vmatprep.subr.bf16.mxu0 0
    %252 = vmatpush2.bf16.msra.mxu0 0
    %253 = vmatprep.subr.bf16.mxu0 0
    %254 = vmatpush2.bf16.msra.mxu0 0
    %255 = vmatprep.subr.bf16.mxu0 0
    %256 = vmatpush2.bf16.msra.mxu0 0
    %257 = vmatprep.subr.bf16.mxu0 0
    %258 = vmatpush2.bf16.msra.mxu0 0
    %259 = vmatprep.subr.bf16.mxu0 0
    %260 = vmatpush2.bf16.msra.mxu0 0
    %261 = vmatprep.subr.bf16.mxu0 0
    %262 = vmatpush2.bf16.msra.mxu0 0
    %263 = vmatprep.subr.bf16.mxu0 0
    %264 = vmatpush2.bf16.msra.mxu0 0
    %265 = vmatprep.subr.bf16.mxu0 0
    %266 = vmatpush2.bf16.msra.mxu0 0
    %267 = vmatprep.mubr.bf16.mxu0 0
    %268 = vmatmul.mubr.bf16.gmra.mxu0 %v163
    %v269 = vpop.f32.mrf.mxu0
    %v270 = vadd.f32 %v185, %v269
    %v271 = vpop.f32.mrf.mxu0
    %v272 = vpop.f32.mrf.mxu0
    %v273 = vpop.f32.mrf.mxu0
    %274 = vdwg.mxu0
    %275 = vst [vmem:[#allocation7] sm:$0xff] %v270
    // Predicated region
    $region30: #{forward.1} parent=1 // pred_check
      _
    $region31: #{forward.1} parent=1 // pred_check_branch
      %277 = sbr.rel (0) target = $region33
    $region32: #{forward.1} parent=1 // pred_region
      %s279 = ssub.s32 128, 128
      %280 = vsyncadd [#allocation4], %s279
      %s282 = sshll.u32 [#allocation7], 4
      %s283 = int_to_ptr.vmem [resolvable:$true] %s282
      %285 = dma.vmem_to_hbm [thread:$0]  %s283, 128, %s5, [#allocation4]
    $region33: #{forward.1} parent=1 // pred_fallthru
      _
    // Predicated region
    $region34: #{forward.1} parent=1 // pred_check
      _
    $region35: #{forward.1} parent=1 // pred_check_branch
      %287 = sbr.rel (0) target = $region37
    $region36: #{forward.1} parent=1 // pred_region
      %288 = dma.done [#allocation4], 128
    $region37: #{forward.1} parent=1 // pred_fallthru
      _
    %289 = vsyncpa [#allocation3], 1
    %290 = vsyncpa [#allocation6], 1
    %291 = vsyncpa [#allocation4], 1

</llo_original>
